<compile_context>
chip_gen: v5e
topology: v5e:2x2
jax: 0.10.0
libtpu: 0.0.40
codegen_flags: <defaults>
</compile_context>

<pallas_src>
import functools
import math

import jax
import jax.numpy as jnp
from jax.experimental import pallas as pl
from jax.experimental.pallas import tpu as pltpu

EPS = 1e-4
ACT_SCALE = 0.596  # MPMLP divides silu(.) by this constant.


def _unit_norm_rows(w, eps=EPS):
    """EDM2-style unit_norm over all dims except dim 0 (plain JAX, runs once)."""
    w32 = w.astype(jnp.float32)
    n = jnp.sqrt(jnp.sum(jnp.square(w32), axis=1, keepdims=True))
    alpha = 1.0 / math.sqrt(w.shape[1])
    return (w32 / (eps + n * alpha)).astype(w.dtype)


def _mpmlp_kernel(x_ref, w1t_ref, w2t_ref, o_ref, *, inv_act_scale):
    """Fused MPMLP body for one M-tile.

    x_ref:   (tm, dim)       input row tile (native dtype, no up-cast)
    w1t_ref: (dim, hidden)   pre-normalised, pre-transposed lin1 weight (resident)
    w2t_ref: (hidden, dim)   pre-normalised, pre-transposed lin2 weight (resident)
    o_ref:   (tm, dim)       output row tile
    """
    # First projection on the MXU, f32 accumulation.
    h = jnp.dot(x_ref[...], w1t_ref[...], preferred_element_type=jnp.float32)
    # silu(h) / 0.596  ==  (h / 0.596) * sigmoid(h), computed in f32
    # (exp on the EUP, divide on the VPU).
    h = (h * inv_act_scale) / (1.0 + jnp.exp(-h))
    # Second projection: cast the activation back to the weight dtype so bf16
    # weights get a bf16 MXU pass; accumulate in f32.
    y = jnp.dot(h.astype(w2t_ref.dtype), w2t_ref[...],
                preferred_element_type=jnp.float32)
    o_ref[...] = y.astype(o_ref.dtype)


def _round_up(x, m):
    return (x + m - 1) // m * m


def mp_mlp(x, w1, w2, *, eps=EPS, max_tm=512):
    """Pallas MPMLP forward.

    x:  (..., dim)
    w1: (hidden, dim)   = lin1.weight  (out_features=hidden, in_features=dim)
    w2: (dim, hidden)   = lin2.weight
    """
    *lead, dim = x.shape
    hidden = w1.shape[0]
    assert w1.shape == (hidden, dim), "lin1 weight must be (mult*dim, dim)"
    assert w2.shape == (dim, hidden), "lin2 weight must be (dim, mult*dim)"

    # --- hoisted, once-per-forward weight work (O(out*in), negligible) ------
    # Normalise, then transpose so the kernel is a plain lane-dense GEMM with
    # no per-step transpose of the (resident) weights.
    w1t = _unit_norm_rows(w1, eps).T  # (dim, hidden)
    w2t = _unit_norm_rows(w2, eps).T  # (hidden, dim)

    # --- flatten leading dims and pick the M tile ---------------------------
    x2 = x.reshape(-1, dim)
    m = x2.shape[0]
    tile_m = min(max_tm, _round_up(max(m, 1), 8))  # single grid step for tiny M
    m_pad = _round_up(max(m, 1), tile_m)
    if m_pad != m:
        x2 = jnp.pad(x2, ((0, m_pad - m), (0, 0)))
    grid = (m_pad // tile_m,)

    # --- VMEM budgeting: raise the scoped limit only when actually needed ---
    # (helps v5e's 16 MiB default; never exceeds 48 MiB so v7x's 64 MiB
    #  physical VMEM keeps headroom).
    x_bytes = jnp.dtype(x2.dtype).itemsize
    w_bytes = jnp.dtype(w1t.dtype).itemsize
    est_vmem = (
        2 * tile_m * dim * x_bytes          # double-buffered x tiles
        + 2 * tile_m * dim * x_bytes        # double-buffered out tiles
        + 2 * 2 * dim * hidden * w_bytes    # resident w1t + w2t (+buffering)
        + tile_m * hidden * 4               # f32 intermediate activation
    )
    cp_kwargs = {"dimension_semantics": ("parallel",)}
    if est_vmem > 12 * 1024 * 1024:
        cp_kwargs["vmem_limit_bytes"] = int(
            min(max(2 * est_vmem, 32 * 1024 * 1024), 48 * 1024 * 1024)
        )
    # NOTE: for very wide MLPs whose two weights cannot fit in VMEM together,
    # an N/hidden grid axis would be needed; not required at these shapes.

    out = pl.pallas_call(
        functools.partial(_mpmlp_kernel, inv_act_scale=1.0 / ACT_SCALE),
        out_shape=jax.ShapeDtypeStruct((m_pad, dim), x.dtype),
        grid_spec=pltpu.PrefetchScalarGridSpec(
            num_scalar_prefetch=0,
            grid=grid,
            in_specs=[
                # input row tile
                pl.BlockSpec((tile_m, dim), lambda i: (i, 0)),
                # full weights, same block every grid step (stay resident)
                pl.BlockSpec((dim, hidden), lambda i: (0, 0)),
                pl.BlockSpec((hidden, dim), lambda i: (0, 0)),
            ],
            out_specs=pl.BlockSpec((tile_m, dim), lambda i: (i, 0)),
        ),
        compiler_params=pltpu.CompilerParams(**cp_kwargs),
    )(x2, w1t, w2t)

    out = out[:m]
    return out.reshape(*lead, dim)


if __name__ == "__main__":
    # Small shapes implied by the module: batch=2, seq=8, dim=32, mult=2.
    batch, seq, dim, mult = 2, 8, 32, 2
    hidden = mult * dim

    key = jax.random.PRNGKey(0)
    kx, k1, k2 = jax.random.split(key, 3)

    x = jax.random.normal(kx, (batch, seq, dim), dtype=jnp.float32)
    # __init__: weight = unit_norm(randn(out_features, in_features))
    w1 = _unit_norm_rows(jax.random.normal(k1, (hidden, dim), dtype=jnp.float32))
    w2 = _unit_norm_rows(jax.random.normal(k2, (dim, hidden), dtype=jnp.float32))

    y = mp_mlp(x, w1, w2)
    y = jax.block_until_ready(y)

    # Pure-JAX reference of MPMLP.forward (high precision to match f32 MXU path).
    h_ref = jnp.einsum("bsi,oi->bso", x, _unit_norm_rows(w1), precision="highest")
    h_ref = (h_ref * jax.nn.sigmoid(h_ref)) / ACT_SCALE
    y_ref = jnp.einsum("bsh,oh->bso", h_ref, _unit_norm_rows(w2),
                       precision="highest")

    assert y.shape == (batch, seq, dim)
    assert jnp.allclose(y, y_ref, atol=1e-3, rtol=1e-3), (
        float(jnp.max(jnp.abs(y - y_ref))))

    print("KERNEL_OK")
</pallas_src>

<mosaic_0001>
module attributes {stable_mosaic.version = 11 : i64} {
  func.func @_mpmlp_kernel(%arg0: i32, %arg1: memref<16x32xf32, #tpu.memory_space<vmem>>, %arg2: memref<32x64xf32, #tpu.memory_space<vmem>>, %arg3: memref<64x32xf32, #tpu.memory_space<vmem>>, %arg4: memref<16x32xf32, #tpu.memory_space<vmem>>) attributes {dimension_semantics = [#tpu.dimension_semantics<parallel>], iteration_bounds = array<i64: 1>, scalar_prefetch = 0 : i64, scratch_operands = 0 : i64, tpu.core_type = #tpu.core_type<tc>, window_params = [{transform_indices = @transform_0, window_bounds = array<i64: 16, 32>}, {pipeline_mode = #tpu.pipeline_mode<synchronous>, transform_indices = @transform_1, window_bounds = array<i64: 32, 64>}, {pipeline_mode = #tpu.pipeline_mode<synchronous>, transform_indices = @transform_2, window_bounds = array<i64: 64, 32>}, {transform_indices = @transform_3, window_bounds = array<i64: 16, 32>}]} {
    %c0 = arith.constant 0 : index
    %c0_0 = arith.constant 0 : index
    %0 = vector.load %arg1[%c0, %c0_0] : memref<16x32xf32, #tpu.memory_space<vmem>>, vector<16x32xf32>
    %c0_1 = arith.constant 0 : index
    %c0_2 = arith.constant 0 : index
    %1 = vector.load %arg2[%c0_1, %c0_2] : memref<32x64xf32, #tpu.memory_space<vmem>>, vector<32x64xf32>
    %cst = arith.constant dense<0.000000e+00> : vector<16x64xf32>
    %2 = tpu.matmul %0, %1, %cst {dimension_numbers = #tpu.dot_dimension_numbers<[1], [0], [0], [1], [0, 0, 1, 1], [], []>} : vector<16x32xf32>, vector<32x64xf32>, vector<16x64xf32> -> vector<16x64xf32>
    %cst_3 = arith.constant 1.67785239 : f32
    %3 = vector.broadcast %cst_3 : f32 to vector<16x64xf32>
    %4 = arith.mulf %2, %3 : vector<16x64xf32>
    %cst_4 = arith.constant 0.000000e+00 : f32
    %5 = vector.broadcast %cst_4 : f32 to vector<16x64xf32>
    %6 = arith.subf %5, %2 : vector<16x64xf32>
    %7 = math.exp %6 : vector<16x64xf32>
    %cst_5 = arith.constant 1.000000e+00 : f32
    %8 = vector.broadcast %cst_5 : f32 to vector<16x64xf32>
    %9 = arith.addf %8, %7 : vector<16x64xf32>
    %10 = arith.divf %4, %9 : vector<16x64xf32>
    %c0_6 = arith.constant 0 : index
    %c0_7 = arith.constant 0 : index
    %11 = vector.load %arg3[%c0_6, %c0_7] : memref<64x32xf32, #tpu.memory_space<vmem>>, vector<64x32xf32>
    %cst_8 = arith.constant dense<0.000000e+00> : vector<16x32xf32>
    %12 = tpu.matmul %10, %11, %cst_8 {dimension_numbers = #tpu.dot_dimension_numbers<[1], [0], [0], [1], [0, 0, 1, 1], [], []>} : vector<16x64xf32>, vector<64x32xf32>, vector<16x32xf32> -> vector<16x32xf32>
    %c0_9 = arith.constant 0 : index
    %c0_10 = arith.constant 0 : index
    %13 = vector.load %arg4[%c0_9, %c0_10] : memref<16x32xf32, #tpu.memory_space<vmem>>, vector<16x32xf32>
    tpu.vector_store %arg4[%c0_9, %c0_10], %12 {strides = array<i32>} : memref<16x32xf32, #tpu.memory_space<vmem>>, vector<16x32xf32>,
    return
  }
  func.func @transform_0(%arg0: i32) -> (i32, i32) {
    %c0_i32 = arith.constant 0 : i32
    %c0_i32_0 = arith.constant 0 : i32
    return %arg0, %c0_i32 : i32, i32
  }
  func.func @transform_1(%arg0: i32) -> (i32, i32) {
    %c0_i32 = arith.constant 0 : i32
    %c0_i32_0 = arith.constant 0 : i32
    %c0_i32_1 = arith.constant 0 : i32
    return %c0_i32, %c0_i32_0 : i32, i32
  }
  func.func @transform_2(%arg0: i32) -> (i32, i32) {
    %c0_i32 = arith.constant 0 : i32
    %c0_i32_0 = arith.constant 0 : i32
    %c0_i32_1 = arith.constant 0 : i32
    return %c0_i32, %c0_i32_0 : i32, i32
  }
  func.func @transform_3(%arg0: i32) -> (i32, i32) {
    %c0_i32 = arith.constant 0 : i32
    %c0_i32_0 = arith.constant 0 : i32
    return %arg0, %c0_i32 : i32, i32
  }
}

</mosaic_0001>

<llo_original>
// kernel: tpu_custom_call.1
$region0: #{tpu_custom_call.1}
  #allocation0 [shape = 'u32[]', space=smem, size = 0x4, offset = 0x4, fixed_abs, tag = 'smem constant byte address 0x4 - core index']
  #allocation1 [shape = 'u32[72,128]{1,0:T(1,128)}', space=vmem, size = 0x9000, scoped, tag = 'internal scratch']
  %s0 = inlined_call_operand.vmem [shape: f32[16,32], index: 0, kind: input, shape index: {}]
  %s1 = inlined_call_operand.vmem [shape: f32[32,64], index: 1, kind: input, shape index: {}]
  %s2 = inlined_call_operand.vmem [shape: f32[64,32], index: 2, kind: input, shape index: {}]
  %s3 = inlined_call_operand.hbm [shape: f32[16,32], index: 3, kind: output, shape index: {}]
  %s4 = sld [smem:[#allocation0]]
  $region22: #{tpu_custom_call.1} parent=0
    _
  %s6 = ssub.s32 1, %s4
  %s7 = scalar_select 0, %s6, %s4
  $region1: #{tpu_custom_call.1} parent=0
    #allocation2 [shape = 'u8[8192]{0}', space=vmem, size = 0x2000, scoped, tag = 'output window, operand 0, single buffered']
    #allocation3 [shape = 's32[1]{0}', space=sflag, size = 0x4, scoped, tag = 'scoped memory for tpu_custom_call.1']
    %8 = vsyncpa [#allocation3], 0
    // Predicated region
    $region2: #{tpu_custom_call.1} parent=1 // pred_check
      _
    $region3: #{tpu_custom_call.1} parent=1 // pred_check_branch
      %10 = sbr.rel (0) target = $region5
    $region4: #{tpu_custom_call.1} parent=1 // pred_region
      _
    $region5: #{tpu_custom_call.1} parent=1 // pred_fallthru
      _
    // Predicated region
    $region6: #{tpu_custom_call.1} parent=1 // pred_check
      _
    $region7: #{tpu_custom_call.1} parent=1 // pred_check_branch
      %12 = sbr.rel (0) target = $region9
    $region8: #{tpu_custom_call.1} parent=1 // pred_region
      _
    $region9: #{tpu_custom_call.1} parent=1 // pred_fallthru
      _
    // Predicated region
    $region10: #{tpu_custom_call.1} parent=1 // pred_check
      _
    $region11: #{tpu_custom_call.1} parent=1 // pred_check_branch
      %14 = sbr.rel (0) target = $region13
    $region12: #{tpu_custom_call.1} parent=1 // pred_region
      _
    $region13: #{tpu_custom_call.1} parent=1 // pred_fallthru
      _
    %v15 = vld [vmem:[%s0] sm:$0xff]
    %v16 = vld [vmem:[%s0 + $0x8] sm:$0xff]
    %v17 = vld [vmem:[%s1] sm:$0xff]
    %v18 = vld [vmem:[%s1 + $0x8] sm:$0xff]
    %v19 = vld [vmem:[%s1 + $0x10] sm:$0xff]
    %v20 = vld [vmem:[%s1 + $0x18] sm:$0xff]
    %vm21 = vcmask 261120
    %v23 = vsel %vm21, %v15, 0
    %v26 = vsel %vm21, %v16, 0
    %28 = vmatpush.msra.mxu0 0.0
    %29 = vmatpush.msra.mxu0 0.0
    %30 = vmatpush.msra.mxu0 0.0
    %31 = vmatpush.msra.mxu0 0.0
    %32 = vmatpush.msra.mxu0 0.0
    %33 = vmatpush.msra.mxu0 0.0
    %34 = vmatpush.msra.mxu0 0.0
    %35 = vmatpush.msra.mxu0 0.0
    %36 = vmatpush.msra.mxu0 0.0
    %37 = vmatpush.msra.mxu0 0.0
    %38 = vmatpush.msra.mxu0 0.0
    %39 = vmatpush.msra.mxu0 0.0
    %40 = vmatpush.msra.mxu0 %v20
    %41 = vmatpush.msra.mxu0 %v19
    %42 = vmatpush.msra.mxu0 %v18
    %43 = vmatpush.msra.mxu0 %v17
    %44 = vmatmul.f32.gmra.mxu0 %v23
    %v45 = vpop.f32.mrf.mxu0
    %v46 = vadd.f32 0.0, %v45
    %47 = vmatmul.f32.gmra.mxu0 %v26
    %v48 = vpop.f32.mrf.mxu0
    %v49 = vadd.f32 0.0, %v48
    %50 = vdwg.mxu0
    %v51 = vmul.f32 %v46, 1.6778524
    %v52 = vmul.f32 %v49, 1.6778524
    %v53 = vsub.f32 0.0, %v46
    %v54 = vsub.f32 0.0, %v49
    %v55 = vmul.f32 %v53, 1.442695
    %v56 = vpow.pop %v55
    %v57 = vmul.f32 %v54, 1.442695
    %v58 = vpow.pop %v57
    %v59 = vadd.f32 %v56, 1.0
    %v60 = vadd.f32 %v58, 1.0
    %v61 = vrcp.pop %v59
    %v62 = vmul.f32 %v59, %v61
    %v63 = vsub.f32 1.0, %v62
    %v64 = vmul.f32 %v61, %v63
    %v65 = vadd.f32 %v61, %v64
    %vm66 = vweird.f32 %v59
    %vm67 = vweird.f32 %v61
    %vm68 = vmor %vm66, %vm67
    %v69 = vsel %vm68, %v61, %v65
    %v70 = vand.u32 2147483647, %v59
    %vm71 = vcmp.eq.f32.partialorder %v70, 8.507059e+37
    %v72 = vand.u32 %v59, 2147483648
    %v73 = vor.u32 1.1754944e-38, %v72
    %v74 = vsel %vm71, %v73, %v69
    %v75 = vmul.f32 %v51, %v74
    %v76 = vrcp.pop %v60
    %v77 = vmul.f32 %v60, %v76
    %v78 = vsub.f32 1.0, %v77
    %v79 = vmul.f32 %v76, %v78
    %v80 = vadd.f32 %v76, %v79
    %vm81 = vweird.f32 %v60
    %vm82 = vweird.f32 %v76
    %vm83 = vmor %vm81, %vm82
    %v84 = vsel %vm83, %v76, %v80
    %v85 = vand.u32 2147483647, %v60
    %vm86 = vcmp.eq.f32.partialorder %v85, 8.507059e+37
    %v87 = vand.u32 %v60, 2147483648
    %v88 = vor.u32 1.1754944e-38, %v87
    %v89 = vsel %vm86, %v88, %v84
    %v90 = vmul.f32 %v52, %v89
    %v91 = vld [vmem:[%s2] sm:$0xff]
    %v92 = vld [vmem:[%s2 + $0x8] sm:$0xff]
    %v93 = vld [vmem:[%s2 + $0x10] sm:$0xff]
    %v94 = vld [vmem:[%s2 + $0x18] sm:$0xff]
    %v95 = vld [vmem:[%s2 + $0x20] sm:$0xff]
    %v96 = vld [vmem:[%s2 + $0x28] sm:$0xff]
    %v97 = vld [vmem:[%s2 + $0x30] sm:$0xff]
    %v98 = vld [vmem:[%s2 + $0x38] sm:$0xff]
    %vm99 = vcmask 523264
    %v101 = vsel %vm99, %v75, 0
    %v104 = vsel %vm99, %v90, 0
    %106 = vmatpush.msra.mxu0 0.0
    %107 = vmatpush.msra.mxu0 0.0
    %108 = vmatpush.msra.mxu0 0.0
    %109 = vmatpush.msra.mxu0 0.0
    %110 = vmatpush.msra.mxu0 0.0
    %111 = vmatpush.msra.mxu0 0.0
    %112 = vmatpush.msra.mxu0 0.0
    %113 = vmatpush.msra.mxu0 0.0
    %114 = vmatpush.msra.mxu0 %v98
    %115 = vmatpush.msra.mxu0 %v97
    %116 = vmatpush.msra.mxu0 %v96
    %117 = vmatpush.msra.mxu0 %v95
    %118 = vmatpush.msra.mxu0 %v94
    %119 = vmatpush.msra.mxu0 %v93
    %120 = vmatpush.msra.mxu0 %v92
    %121 = vmatpush.msra.mxu0 %v91
    %122 = vmatmul.f32.gmra.mxu0 %v101
    %v123 = vpop.f32.mrf.mxu0
    %v124 = vadd.f32 0.0, %v123
    %125 = vmatmul.f32.gmra.mxu0 %v104
    %v126 = vpop.f32.mrf.mxu0
    %v127 = vadd.f32 0.0, %v126
    %128 = vdwg.mxu0
    %129 = vst.msk [vmem:[#allocation2] sm:$0xff] %vm21, %v124
    %130 = vst.msk [vmem:[#allocation2 + $0x8] sm:$0xff] %vm21, %v127
    // Predicated region
    $region14: #{tpu_custom_call.1} parent=1 // pred_check
      _
    $region15: #{tpu_custom_call.1} parent=1 // pred_check_branch
      %132 = sbr.rel (0) target = $region17
    $region16: #{tpu_custom_call.1} parent=1 // pred_region
      %134 = vsyncadd [#allocation3], 0
      %s135 = sshll.u32 [#allocation2], 4
      %s136 = int_to_ptr.vmem [resolvable:$true] %s135
      %s137 = sshll.u32 %s3, 4
      %s138 = int_to_ptr.hbm [resolvable:$true] %s137
      %143 = dma.vmem_to_hbm [thread:$0]  %s136, 256, %s138, [#allocation3], 128, 128, 8
    $region17: #{tpu_custom_call.1} parent=1 // pred_fallthru
      _
    // Predicated region
    $region18: #{tpu_custom_call.1} parent=1 // pred_check
      _
    $region19: #{tpu_custom_call.1} parent=1 // pred_check_branch
      %145 = sbr.rel (0) target = $region21
    $region20: #{tpu_custom_call.1} parent=1 // pred_region
      %147 = dma.done [#allocation3], 256
    $region21: #{tpu_custom_call.1} parent=1 // pred_fallthru
      _
    %148 = vsyncpa [#allocation3], 1

</llo_original>
